<compile_context>
chip_gen: v7x
topology: tpu7x:2x2x1
jax: 0.10.0
libtpu: 0.0.40
codegen_flags: <defaults>
</compile_context>

<pallas_src>
import functools

import numpy as np
import jax
import jax.numpy as jnp
from jax.experimental import pallas as pl
from jax.experimental.pallas import tpu as pltpu


# ------------------------------------------------------------------ Pallas kernel
def _cost_kernel(logits_ref, boxes_ref, tgt_t_ref, tmin_ref, tmax_ref,
                 area2_ref, onehot_ref, c_ref, *, w_class, w_bbox, w_giou):
    """One (batch, query-tile) step: cost tile [TN, T_pad]."""
    alpha = 0.25
    eps = 1e-6

    # ---- focal classification cost -------------------------------------------
    logits = logits_ref[...]                              # (TN, C)
    p = jax.nn.sigmoid(logits)
    one_m_p = 1.0 - p
    neg_cost = (1.0 - alpha) * (p * p) * (-jnp.log(one_m_p + 1e-8))
    pos_cost = alpha * (one_m_p * one_m_p) * (-jnp.log(p + 1e-8))
    diff = (pos_cost - neg_cost).astype(jnp.bfloat16)     # gamma = 2 -> x*x

    # gather-by-label == matmul with one-hot(labels)^T  (bf16 MXU, f32 accumulate)
    acc = w_class * jnp.dot(diff, onehot_ref[...],
                            preferred_element_type=jnp.float32)   # (TN, T_pad)

    ob = boxes_ref[...]                                   # (TN, 6)  cx cy cz w l h
    tgt_t = tgt_t_ref[...]                                # (6, T_pad) transposed

    # ---- L1 (cdist p=1) bbox cost, folded into the accumulator ----------------
    for d in range(6):
        acc = acc + w_bbox * jnp.abs(ob[:, d:d + 1] - tgt_t[d:d + 1, :])

    # ---- 3D axis-aligned GIoU cost (xyzwlh -> xyzxyz) --------------------------
    p_min = ob[:, 0:3] - 0.5 * ob[:, 3:6]                 # (TN, 3)
    p_max = ob[:, 0:3] + 0.5 * ob[:, 3:6]
    t_min = tmin_ref[...]                                 # (3, T_pad) precomputed
    t_max = tmax_ref[...]

    overlap = None
    enclose = None
    for d in range(3):
        pmn = p_min[:, d:d + 1]                           # (TN, 1)
        pmx = p_max[:, d:d + 1]
        tmn = t_min[d:d + 1, :]                           # (1, T_pad)
        tmx = t_max[d:d + 1, :]
        ov_d = jnp.maximum(jnp.minimum(pmx, tmx) - jnp.maximum(pmn, tmn), 0.0)
        en_d = jnp.maximum(jnp.maximum(pmx, tmx) - jnp.minimum(pmn, tmn), 0.0)
        overlap = ov_d if overlap is None else overlap * ov_d
        enclose = en_d if enclose is None else enclose * en_d

    area1 = ob[:, 3:4] * ob[:, 4:5] * ob[:, 5:6]          # (TN, 1)
    union = jnp.maximum(area1 + area2_ref[...] - overlap, eps)
    enclose = jnp.maximum(enclose, eps)
    inv_union = pl.reciprocal(union, approx=True)         # EUP slot
    inv_enclose = pl.reciprocal(enclose, approx=True)
    # giou = overlap/union - (enclose - union)/enclose = ov*inv_u + u*inv_e - 1
    gious = overlap * inv_union + union * inv_enclose - 1.0

    c_ref[...] = acc - w_giou * gious                     # cost_giou = -giou


def _compute_cost_matrix(logits, boxes, tgt_t, tmin, tmax, area2, onehot,
                         w_class, w_bbox, w_giou, tile_n):
    bs, nq_pad, num_classes = logits.shape
    t_pad = tgt_t.shape[-1]
    n_tiles = nq_pad // tile_n
    kernel = functools.partial(_cost_kernel, w_class=float(w_class),
                               w_bbox=float(w_bbox), w_giou=float(w_giou))
    return pl.pallas_call(
        kernel,
        out_shape=jax.ShapeDtypeStruct((bs, nq_pad, t_pad), jnp.float32),
        grid=(bs, n_tiles),
        in_specs=[
            pl.BlockSpec((None, tile_n, num_classes), lambda b, i: (b, i, 0)),
            pl.BlockSpec((None, tile_n, 6), lambda b, i: (b, i, 0)),
            pl.BlockSpec((None, 6, t_pad), lambda b, i: (b, 0, 0)),
            pl.BlockSpec((None, 3, t_pad), lambda b, i: (b, 0, 0)),
            pl.BlockSpec((None, 3, t_pad), lambda b, i: (b, 0, 0)),
            pl.BlockSpec((None, 1, t_pad), lambda b, i: (b, 0, 0)),
            pl.BlockSpec((None, num_classes, t_pad), lambda b, i: (b, 0, 0)),
        ],
        out_specs=pl.BlockSpec((None, tile_n, t_pad), lambda b, i: (b, i, 0)),
        compiler_params=pltpu.CompilerParams(
            dimension_semantics=("parallel", "parallel"),
            vmem_limit_bytes=32 * 1024 * 1024),
    )(logits, boxes, tgt_t, tmin, tmax, area2, onehot)


# ------------------------------------------------------- host-side Hungarian solve
# TODO(synk): linear_sum_assignment is an inherently sequential scalar algorithm with
# no clean Pallas equivalent; solved on host with a numpy Jonker-Volgenant
# (shortest augmenting path) implementation equivalent to scipy's.
def _linear_sum_assignment(cost):
    cost = np.asarray(cost, dtype=np.float64)
    transposed = False
    if cost.shape[0] > cost.shape[1]:
        cost = cost.T
        transposed = True
    n, m = cost.shape
    INF = np.inf
    u = np.zeros(n + 1)
    v = np.zeros(m + 1)
    p = np.zeros(m + 1, dtype=np.int64)
    way = np.zeros(m + 1, dtype=np.int64)
    for i in range(1, n + 1):
        p[0] = i
        j0 = 0
        minv = np.full(m + 1, INF)
        used = np.zeros(m + 1, dtype=bool)
        while True:
            used[j0] = True
            i0 = p[j0]
            delta = INF
            j1 = -1
            for j in range(1, m + 1):
                if not used[j]:
                    cur = cost[i0 - 1, j - 1] - u[i0] - v[j]
                    if cur < minv[j]:
                        minv[j] = cur
                        way[j] = j0
                    if minv[j] < delta:
                        delta = minv[j]
                        j1 = j
            for j in range(m + 1):
                if used[j]:
                    u[p[j]] += delta
                    v[j] -= delta
                else:
                    minv[j] -= delta
            j0 = j1
            if p[j0] == 0:
                break
        while True:
            j1 = way[j0]
            p[j0] = p[j1]
            j0 = j1
            if j0 == 0:
                break
    rows, cols = [], []
    for j in range(1, m + 1):
        if p[j] != 0:
            rows.append(p[j] - 1)
            cols.append(j - 1)
    rows = np.asarray(rows, dtype=np.int64)
    cols = np.asarray(cols, dtype=np.int64)
    if transposed:
        rows, cols = cols, rows
    order = np.argsort(rows, kind="stable")
    return rows[order], cols[order]


# ------------------------------------------------------------------ module wrapper
def _round_up(x, m):
    return ((x + m - 1) // m) * m


def hungarian_matcher(pred_boxes, pred_logits, gt_boxes, gt_labels,
                      cost_class=1.0, cost_bbox=1.0, cost_giou=1.0):
    """JAX/Pallas equivalent of HungarianMatcher.forward.

    pred_boxes : [bs, nq, 6] f32, pred_logits : [bs, nq, num_classes] f32
    gt_boxes   : list (len bs) of [Ti, >=6] arrays
    gt_labels  : list (len bs) of [Ti] int arrays
    Returns list of (index_i, index_j) int64 numpy-array pairs.
    """
    bs, nq = pred_logits.shape[:2]
    num_classes = pred_logits.shape[-1]
    sizes = [int(np.asarray(b).shape[0]) for b in gt_boxes]

    # Empty-target batch: reference matcher returns empty index pairs.
    if sum(sizes) == 0:
        return [(np.zeros((0,), np.int64), np.zeros((0,), np.int64))
                for _ in range(bs)]

    # ---- prediction-side padding: query axis tiled on sublanes ---------------
    nq8 = _round_up(nq, 8)
    tile_n = min(512, nq8)                     # ~85% HBM roofline tile size
    nq_pad = _round_up(nq8, tile_n)

    logits = jnp.asarray(pred_logits, jnp.float32)
    boxes = jnp.asarray(pred_boxes, jnp.float32)[..., :6]
    if nq_pad != nq:
        logits = jnp.pad(logits, ((0, 0), (0, nq_pad - nq), (0, 0)))
        boxes = jnp.pad(boxes, ((0, 0), (0, nq_pad - nq), (0, 0)))

    # ---- target-side precompute, per batch, lane-dense (last dim = T_pad) ----
    t_pad = _round_up(max(max(sizes), 1), 128)

    tgt_t = np.zeros((bs, 6, t_pad), np.float32)        # transposed boxes
    onehot = np.zeros((bs, num_classes, t_pad), np.float32)
    for b in range(bs):
        s = sizes[b]
        if s == 0:
            continue
        tb = np.asarray(gt_boxes[b], np.float32)[:, :6]
        tgt_t[b, :, :s] = tb.T
        lb = np.asarray(gt_labels[b]).astype(np.int64).reshape(-1)
        onehot[b, lb, np.arange(s)] = 1.0

    tmin = tgt_t[:, 0:3, :] - 0.5 * tgt_t[:, 3:6, :]
    tmax = tgt_t[:, 0:3, :] + 0.5 * tgt_t[:, 3:6, :]
    area2 = tgt_t[:, 3:4, :] * tgt_t[:, 4:5, :] * tgt_t[:, 5:6, :]

    C = _compute_cost_matrix(
        logits, boxes,
        jnp.asarray(tgt_t), jnp.asarray(tmin), jnp.asarray(tmax),
        jnp.asarray(area2), jnp.asarray(onehot, jnp.bfloat16),
        cost_class, cost_bbox, cost_giou, tile_n)
    C = jax.block_until_ready(C)
    C_np = np.asarray(C)                                 # [bs, nq_pad, t_pad]

    indices = []
    for b in range(bs):
        s = sizes[b]
        if s == 0:
            indices.append((np.zeros((0,), np.int64), np.zeros((0,), np.int64)))
            continue
        ci = C_np[b, :nq, :s]                            # drop query/target padding
        r, c = _linear_sum_assignment(ci)
        indices.append((r.astype(np.int64), c.astype(np.int64)))
    return indices


# --------------------------------------------------------------------------- main
if __name__ == "__main__":
    key = jax.random.PRNGKey(0)
    bs, nq, num_classes = 2, 8, 32
    gt_sizes = [3, 5]

    k1, k2, k3, k4, k5, k6 = jax.random.split(key, 6)
    # predicted boxes: centers in [0,10), sizes in [0.5, 2.5)
    pred_centers = jax.random.uniform(k1, (bs, nq, 3)) * 10.0
    pred_sizes = jax.random.uniform(k2, (bs, nq, 3)) * 2.0 + 0.5
    pred_boxes = jnp.concatenate([pred_centers, pred_sizes], axis=-1)
    pred_logits = jax.random.normal(k3, (bs, nq, num_classes), dtype=jnp.float32)

    gt_boxes = []
    gt_labels = []
    kb, kl = k4, k5
    for s in gt_sizes:
        kb, kb_c, kb_s = jax.random.split(kb, 3)
        centers = jax.random.uniform(kb_c, (s, 3)) * 10.0
        sizes = jax.random.uniform(kb_s, (s, 3)) * 2.0 + 0.5
        gt_boxes.append(jnp.concatenate([centers, sizes], axis=-1))
        kl, kl_i = jax.random.split(kl)
        gt_labels.append(jax.random.randint(kl_i, (s,), 0, num_classes))

    indices = hungarian_matcher(pred_boxes, pred_logits, gt_boxes, gt_labels,
                                cost_class=1.0, cost_bbox=1.0, cost_giou=1.0)

    # basic sanity checks on the matching structure
    for (i_idx, j_idx), s in zip(indices, gt_sizes):
        assert len(i_idx) == len(j_idx) == min(nq, s)
        assert i_idx.dtype == np.int64 and j_idx.dtype == np.int64
        assert len(set(i_idx.tolist())) == len(i_idx)
        assert len(set(j_idx.tolist())) == len(j_idx)

    print("KERNEL_OK")
</pallas_src>

<mosaic_0001>
module attributes {stable_mosaic.version = 11 : i64} {
  func.func @_cost_kernel(%arg0: i32, %arg1: i32, %arg2: memref<1x8x32xf32, #tpu.memory_space<vmem>>, %arg3: memref<1x8x6xf32, #tpu.memory_space<vmem>>, %arg4: memref<1x6x128xf32, #tpu.memory_space<vmem>>, %arg5: memref<1x3x128xf32, #tpu.memory_space<vmem>>, %arg6: memref<1x3x128xf32, #tpu.memory_space<vmem>>, %arg7: memref<1x1x128xf32, #tpu.memory_space<vmem>>, %arg8: memref<1x32x128xbf16, #tpu.memory_space<vmem>>, %arg9: memref<1x8x128xf32, #tpu.memory_space<vmem>>) attributes {dimension_semantics = [#tpu.dimension_semantics<parallel>, #tpu.dimension_semantics<parallel>], iteration_bounds = array<i64: 2, 1>, scalar_prefetch = 0 : i64, scratch_operands = 0 : i64, tpu.core_type = #tpu.core_type<tc>, window_params = [{transform_indices = @transform_0, window_bounds = array<i64: 1, 8, 32>}, {transform_indices = @transform_1, window_bounds = array<i64: 1, 8, 6>}, {transform_indices = @transform_2, window_bounds = array<i64: 1, 6, 128>}, {transform_indices = @transform_3, window_bounds = array<i64: 1, 3, 128>}, {transform_indices = @transform_4, window_bounds = array<i64: 1, 3, 128>}, {transform_indices = @transform_5, window_bounds = array<i64: 1, 1, 128>}, {transform_indices = @transform_6, window_bounds = array<i64: 1, 32, 128>}, {transform_indices = @transform_7, window_bounds = array<i64: 1, 8, 128>}]} {
    %c0 = arith.constant 0 : index
    %c0_0 = arith.constant 0 : index
    %c0_1 = arith.constant 0 : index
    %0 = vector.load %arg2[%c0, %c0_0, %c0_1] : memref<1x8x32xf32, #tpu.memory_space<vmem>>, vector<1x8x32xf32>
    %1 = vector.shape_cast %0 : vector<1x8x32xf32> to vector<8x32xf32>
    %2 = arith.negf %1 : vector<8x32xf32>
    %3 = math.exp %2 : vector<8x32xf32>
    %cst = arith.constant 1.000000e+00 : f32
    %4 = vector.broadcast %cst : f32 to vector<8x32xf32>
    %5 = arith.addf %4, %3 : vector<8x32xf32>
    %6 = arith.divf %4, %5 : vector<8x32xf32>
    %cst_2 = arith.constant 1.000000e+00 : f32
    %7 = vector.broadcast %cst_2 : f32 to vector<8x32xf32>
    %8 = arith.subf %7, %6 : vector<8x32xf32>
    %9 = arith.mulf %6, %6 : vector<8x32xf32>
    %cst_3 = arith.constant 7.500000e-01 : f32
    %10 = vector.broadcast %cst_3 : f32 to vector<8x32xf32>
    %11 = arith.mulf %10, %9 : vector<8x32xf32>
    %cst_4 = arith.constant 9.99999993E-9 : f32
    %12 = vector.broadcast %cst_4 : f32 to vector<8x32xf32>
    %13 = arith.addf %8, %12 : vector<8x32xf32>
    %14 = math.log %13 : vector<8x32xf32>
    %cst_5 = arith.constant 0.000000e+00 : f32
    %15 = vector.broadcast %cst_5 : f32 to vector<8x32xf32>
    %16 = arith.subf %15, %14 : vector<8x32xf32>
    %17 = arith.mulf %11, %16 : vector<8x32xf32>
    %18 = arith.mulf %8, %8 : vector<8x32xf32>
    %cst_6 = arith.constant 2.500000e-01 : f32
    %19 = vector.broadcast %cst_6 : f32 to vector<8x32xf32>
    %20 = arith.mulf %19, %18 : vector<8x32xf32>
    %cst_7 = arith.constant 9.99999993E-9 : f32
    %21 = vector.broadcast %cst_7 : f32 to vector<8x32xf32>
    %22 = arith.addf %6, %21 : vector<8x32xf32>
    %23 = math.log %22 : vector<8x32xf32>
    %cst_8 = arith.constant 0.000000e+00 : f32
    %24 = vector.broadcast %cst_8 : f32 to vector<8x32xf32>
    %25 = arith.subf %24, %23 : vector<8x32xf32>
    %26 = arith.mulf %20, %25 : vector<8x32xf32>
    %27 = arith.subf %26, %17 : vector<8x32xf32>
    %28 = arith.truncf %27 : vector<8x32xf32> to vector<8x32xbf16>
    %c0_9 = arith.constant 0 : index
    %c0_10 = arith.constant 0 : index
    %c0_11 = arith.constant 0 : index
    %29 = vector.load %arg8[%c0_9, %c0_10, %c0_11] : memref<1x32x128xbf16, #tpu.memory_space<vmem>>, vector<1x32x128xbf16>
    %30 = vector.shape_cast %29 : vector<1x32x128xbf16> to vector<32x128xbf16>
    %cst_12 = arith.constant dense<0.000000e+00> : vector<8x128xf32>
    %31 = tpu.matmul %28, %30, %cst_12 {dimension_numbers = #tpu.dot_dimension_numbers<[1], [0], [0], [1], [0, 0, 1, 1], [], []>} : vector<8x32xbf16>, vector<32x128xbf16>, vector<8x128xf32> -> vector<8x128xf32>
    %cst_13 = arith.constant 1.000000e+00 : f32
    %32 = vector.broadcast %cst_13 : f32 to vector<8x128xf32>
    %33 = arith.mulf %32, %31 : vector<8x128xf32>
    %c0_14 = arith.constant 0 : index
    %c0_15 = arith.constant 0 : index
    %c0_16 = arith.constant 0 : index
    %34 = vector.load %arg3[%c0_14, %c0_15, %c0_16] : memref<1x8x6xf32, #tpu.memory_space<vmem>>, vector<1x8x6xf32>
    %35 = vector.shape_cast %34 : vector<1x8x6xf32> to vector<8x6xf32>
    %c0_17 = arith.constant 0 : index
    %c0_18 = arith.constant 0 : index
    %c0_19 = arith.constant 0 : index
    %36 = vector.load %arg4[%c0_17, %c0_18, %c0_19] : memref<1x6x128xf32, #tpu.memory_space<vmem>>, vector<1x6x128xf32>
    %37 = vector.shape_cast %36 : vector<1x6x128xf32> to vector<6x128xf32>
    %38 = vector.extract_strided_slice %35 {offsets = [0, 0], sizes = [8, 1], strides = [1, 1]} : vector<8x6xf32> to vector<8x1xf32>
    %39 = vector.extract_strided_slice %37 {offsets = [0, 0], sizes = [1, 128], strides = [1, 1]} : vector<6x128xf32> to vector<1x128xf32>
    %40 = vector.broadcast %38 : vector<8x1xf32> to vector<8x128xf32>
    %41 = vector.broadcast %39 : vector<1x128xf32> to vector<8x128xf32>
    %42 = arith.subf %40, %41 : vector<8x128xf32>
    %43 = math.absf %42 : vector<8x128xf32>
    %cst_20 = arith.constant 1.000000e+00 : f32
    %44 = vector.broadcast %cst_20 : f32 to vector<8x128xf32>
    %45 = arith.mulf %44, %43 : vector<8x128xf32>
    %46 = arith.addf %33, %45 : vector<8x128xf32>
    %47 = vector.extract_strided_slice %35 {offsets = [0, 1], sizes = [8, 1], strides = [1, 1]} : vector<8x6xf32> to vector<8x1xf32>
    %48 = vector.extract_strided_slice %37 {offsets = [1, 0], sizes = [1, 128], strides = [1, 1]} : vector<6x128xf32> to vector<1x128xf32>
    %49 = vector.broadcast %47 : vector<8x1xf32> to vector<8x128xf32>
    %50 = vector.broadcast %48 : vector<1x128xf32> to vector<8x128xf32>
    %51 = arith.subf %49, %50 : vector<8x128xf32>
    %52 = math.absf %51 : vector<8x128xf32>
    %cst_21 = arith.constant 1.000000e+00 : f32
    %53 = vector.broadcast %cst_21 : f32 to vector<8x128xf32>
    %54 = arith.mulf %53, %52 : vector<8x128xf32>
    %55 = arith.addf %46, %54 : vector<8x128xf32>
    %56 = vector.extract_strided_slice %35 {offsets = [0, 2], sizes = [8, 1], strides = [1, 1]} : vector<8x6xf32> to vector<8x1xf32>
    %57 = vector.extract_strided_slice %37 {offsets = [2, 0], sizes = [1, 128], strides = [1, 1]} : vector<6x128xf32> to vector<1x128xf32>
    %58 = vector.broadcast %56 : vector<8x1xf32> to vector<8x128xf32>
    %59 = vector.broadcast %57 : vector<1x128xf32> to vector<8x128xf32>
    %60 = arith.subf %58, %59 : vector<8x128xf32>
    %61 = math.absf %60 : vector<8x128xf32>
    %cst_22 = arith.constant 1.000000e+00 : f32
    %62 = vector.broadcast %cst_22 : f32 to vector<8x128xf32>
    %63 = arith.mulf %62, %61 : vector<8x128xf32>
    %64 = arith.addf %55, %63 : vector<8x128xf32>
    %65 = vector.extract_strided_slice %35 {offsets = [0, 3], sizes = [8, 1], strides = [1, 1]} : vector<8x6xf32> to vector<8x1xf32>
    %66 = vector.extract_strided_slice %37 {offsets = [3, 0], sizes = [1, 128], strides = [1, 1]} : vector<6x128xf32> to vector<1x128xf32>
    %67 = vector.broadcast %65 : vector<8x1xf32> to vector<8x128xf32>
    %68 = vector.broadcast %66 : vector<1x128xf32> to vector<8x128xf32>
    %69 = arith.subf %67, %68 : vector<8x128xf32>
    %70 = math.absf %69 : vector<8x128xf32>
    %cst_23 = arith.constant 1.000000e+00 : f32
    %71 = vector.broadcast %cst_23 : f32 to vector<8x128xf32>
    %72 = arith.mulf %71, %70 : vector<8x128xf32>
    %73 = arith.addf %64, %72 : vector<8x128xf32>
    %74 = vector.extract_strided_slice %35 {offsets = [0, 4], sizes = [8, 1], strides = [1, 1]} : vector<8x6xf32> to vector<8x1xf32>
    %75 = vector.extract_strided_slice %37 {offsets = [4, 0], sizes = [1, 128], strides = [1, 1]} : vector<6x128xf32> to vector<1x128xf32>
    %76 = vector.broadcast %74 : vector<8x1xf32> to vector<8x128xf32>
    %77 = vector.broadcast %75 : vector<1x128xf32> to vector<8x128xf32>
    %78 = arith.subf %76, %77 : vector<8x128xf32>
    %79 = math.absf %78 : vector<8x128xf32>
    %cst_24 = arith.constant 1.000000e+00 : f32
    %80 = vector.broadcast %cst_24 : f32 to vector<8x128xf32>
    %81 = arith.mulf %80, %79 : vector<8x128xf32>
    %82 = arith.addf %73, %81 : vector<8x128xf32>
    %83 = vector.extract_strided_slice %35 {offsets = [0, 5], sizes = [8, 1], strides = [1, 1]} : vector<8x6xf32> to vector<8x1xf32>
    %84 = vector.extract_strided_slice %37 {offsets = [5, 0], sizes = [1, 128], strides = [1, 1]} : vector<6x128xf32> to vector<1x128xf32>
    %85 = vector.broadcast %83 : vector<8x1xf32> to vector<8x128xf32>
    %86 = vector.broadcast %84 : vector<1x128xf32> to vector<8x128xf32>
    %87 = arith.subf %85, %86 : vector<8x128xf32>
    %88 = math.absf %87 : vector<8x128xf32>
    %cst_25 = arith.constant 1.000000e+00 : f32
    %89 = vector.broadcast %cst_25 : f32 to vector<8x128xf32>
    %90 = arith.mulf %89, %88 : vector<8x128xf32>
    %91 = arith.addf %82, %90 : vector<8x128xf32>
    %92 = vector.extract_strided_slice %35 {offsets = [0, 0], sizes = [8, 3], strides = [1, 1]} : vector<8x6xf32> to vector<8x3xf32>
    %93 = vector.extract_strided_slice %35 {offsets = [0, 3], sizes = [8, 3], strides = [1, 1]} : vector<8x6xf32> to vector<8x3xf32>
    %cst_26 = arith.constant 5.000000e-01 : f32
    %94 = vector.broadcast %cst_26 : f32 to vector<8x3xf32>
    %95 = arith.mulf %94, %93 : vector<8x3xf32>
    %96 = arith.subf %92, %95 : vector<8x3xf32>
    %97 = vector.extract_strided_slice %35 {offsets = [0, 0], sizes = [8, 3], strides = [1, 1]} : vector<8x6xf32> to vector<8x3xf32>
    %98 = vector.extract_strided_slice %35 {offsets = [0, 3], sizes = [8, 3], strides = [1, 1]} : vector<8x6xf32> to vector<8x3xf32>
    %cst_27 = arith.constant 5.000000e-01 : f32
    %99 = vector.broadcast %cst_27 : f32 to vector<8x3xf32>
    %100 = arith.mulf %99, %98 : vector<8x3xf32>
    %101 = arith.addf %97, %100 : vector<8x3xf32>
    %c0_28 = arith.constant 0 : index
    %c0_29 = arith.constant 0 : index
    %c0_30 = arith.constant 0 : index
    %102 = vector.load %arg5[%c0_28, %c0_29, %c0_30] : memref<1x3x128xf32, #tpu.memory_space<vmem>>, vector<1x3x128xf32>
    %103 = vector.shape_cast %102 : vector<1x3x128xf32> to vector<3x128xf32>
    %c0_31 = arith.constant 0 : index
    %c0_32 = arith.constant 0 : index
    %c0_33 = arith.constant 0 : index
    %104 = vector.load %arg6[%c0_31, %c0_32, %c0_33] : memref<1x3x128xf32, #tpu.memory_space<vmem>>, vector<1x3x128xf32>
    %105 = vector.shape_cast %104 : vector<1x3x128xf32> to vector<3x128xf32>
    %106 = vector.extract_strided_slice %96 {offsets = [0, 0], sizes = [8, 1], strides = [1, 1]} : vector<8x3xf32> to vector<8x1xf32>
    %107 = vector.extract_strided_slice %101 {offsets = [0, 0], sizes = [8, 1], strides = [1, 1]} : vector<8x3xf32> to vector<8x1xf32>
    %108 = vector.extract_strided_slice %103 {offsets = [0, 0], sizes = [1, 128], strides = [1, 1]} : vector<3x128xf32> to vector<1x128xf32>
    %109 = vector.extract_strided_slice %105 {offsets = [0, 0], sizes = [1, 128], strides = [1, 1]} : vector<3x128xf32> to vector<1x128xf32>
    %110 = vector.broadcast %107 : vector<8x1xf32> to vector<8x128xf32>
    %111 = vector.broadcast %109 : vector<1x128xf32> to vector<8x128xf32>
    %112 = arith.minimumf %110, %111 : vector<8x128xf32>
    %113 = vector.broadcast %106 : vector<8x1xf32> to vector<8x128xf32>
    %114 = vector.broadcast %108 : vector<1x128xf32> to vector<8x128xf32>
    %115 = arith.maximumf %113, %114 : vector<8x128xf32>
    %116 = arith.subf %112, %115 : vector<8x128xf32>
    %cst_34 = arith.constant 0.000000e+00 : f32
    %117 = vector.broadcast %cst_34 : f32 to vector<8x128xf32>
    %118 = arith.maximumf %116, %117 : vector<8x128xf32>
    %119 = vector.broadcast %107 : vector<8x1xf32> to vector<8x128xf32>
    %120 = vector.broadcast %109 : vector<1x128xf32> to vector<8x128xf32>
    %121 = arith.maximumf %119, %120 : vector<8x128xf32>
    %122 = vector.broadcast %106 : vector<8x1xf32> to vector<8x128xf32>
    %123 = vector.broadcast %108 : vector<1x128xf32> to vector<8x128xf32>
    %124 = arith.minimumf %122, %123 : vector<8x128xf32>
    %125 = arith.subf %121, %124 : vector<8x128xf32>
    %cst_35 = arith.constant 0.000000e+00 : f32
    %126 = vector.broadcast %cst_35 : f32 to vector<8x128xf32>
    %127 = arith.maximumf %125, %126 : vector<8x128xf32>
    %128 = vector.extract_strided_slice %96 {offsets = [0, 1], sizes = [8, 1], strides = [1, 1]} : vector<8x3xf32> to vector<8x1xf32>
    %129 = vector.extract_strided_slice %101 {offsets = [0, 1], sizes = [8, 1], strides = [1, 1]} : vector<8x3xf32> to vector<8x1xf32>
    %130 = vector.extract_strided_slice %103 {offsets = [1, 0], sizes = [1, 128], strides = [1, 1]} : vector<3x128xf32> to vector<1x128xf32>
    %131 = vector.extract_strided_slice %105 {offsets = [1, 0], sizes = [1, 128], strides = [1, 1]} : vector<3x128xf32> to vector<1x128xf32>
    %132 = vector.broadcast %129 : vector<8x1xf32> to vector<8x128xf32>
    %133 = vector.broadcast %131 : vector<1x128xf32> to vector<8x128xf32>
    %134 = arith.minimumf %132, %133 : vector<8x128xf32>
    %135 = vector.broadcast %128 : vector<8x1xf32> to vector<8x128xf32>
    %136 = vector.broadcast %130 : vector<1x128xf32> to vector<8x128xf32>
    %137 = arith.maximumf %135, %136 : vector<8x128xf32>
    %138 = arith.subf %134, %137 : vector<8x128xf32>
    %cst_36 = arith.constant 0.000000e+00 : f32
    %139 = vector.broadcast %cst_36 : f32 to vector<8x128xf32>
    %140 = arith.maximumf %138, %139 : vector<8x128xf32>
    %141 = vector.broadcast %129 : vector<8x1xf32> to vector<8x128xf32>
    %142 = vector.broadcast %131 : vector<1x128xf32> to vector<8x128xf32>
    %143 = arith.maximumf %141, %142 : vector<8x128xf32>
    %144 = vector.broadcast %128 : vector<8x1xf32> to vector<8x128xf32>
    %145 = vector.broadcast %130 : vector<1x128xf32> to vector<8x128xf32>
    %146 = arith.minimumf %144, %145 : vector<8x128xf32>
    %147 = arith.subf %143, %146 : vector<8x128xf32>
    %cst_37 = arith.constant 0.000000e+00 : f32
    %148 = vector.broadcast %cst_37 : f32 to vector<8x128xf32>
    %149 = arith.maximumf %147, %148 : vector<8x128xf32>
    %150 = arith.mulf %118, %140 : vector<8x128xf32>
    %151 = arith.mulf %127, %149 : vector<8x128xf32>
    %152 = vector.extract_strided_slice %96 {offsets = [0, 2], sizes = [8, 1], strides = [1, 1]} : vector<8x3xf32> to vector<8x1xf32>
    %153 = vector.extract_strided_slice %101 {offsets = [0, 2], sizes = [8, 1], strides = [1, 1]} : vector<8x3xf32> to vector<8x1xf32>
    %154 = vector.extract_strided_slice %103 {offsets = [2, 0], sizes = [1, 128], strides = [1, 1]} : vector<3x128xf32> to vector<1x128xf32>
    %155 = vector.extract_strided_slice %105 {offsets = [2, 0], sizes = [1, 128], strides = [1, 1]} : vector<3x128xf32> to vector<1x128xf32>
    %156 = vector.broadcast %153 : vector<8x1xf32> to vector<8x128xf32>
    %157 = vector.broadcast %155 : vector<1x128xf32> to vector<8x128xf32>
    %158 = arith.minimumf %156, %157 : vector<8x128xf32>
    %159 = vector.broadcast %152 : vector<8x1xf32> to vector<8x128xf32>
    %160 = vector.broadcast %154 : vector<1x128xf32> to vector<8x128xf32>
    %161 = arith.maximumf %159, %160 : vector<8x128xf32>
    %162 = arith.subf %158, %161 : vector<8x128xf32>
    %cst_38 = arith.constant 0.000000e+00 : f32
    %163 = vector.broadcast %cst_38 : f32 to vector<8x128xf32>
    %164 = arith.maximumf %162, %163 : vector<8x128xf32>
    %165 = vector.broadcast %153 : vector<8x1xf32> to vector<8x128xf32>
    %166 = vector.broadcast %155 : vector<1x128xf32> to vector<8x128xf32>
    %167 = arith.maximumf %165, %166 : vector<8x128xf32>
    %168 = vector.broadcast %152 : vector<8x1xf32> to vector<8x128xf32>
    %169 = vector.broadcast %154 : vector<1x128xf32> to vector<8x128xf32>
    %170 = arith.minimumf %168, %169 : vector<8x128xf32>
    %171 = arith.subf %167, %170 : vector<8x128xf32>
    %cst_39 = arith.constant 0.000000e+00 : f32
    %172 = vector.broadcast %cst_39 : f32 to vector<8x128xf32>
    %173 = arith.maximumf %171, %172 : vector<8x128xf32>
    %174 = arith.mulf %150, %164 : vector<8x128xf32>
    %175 = arith.mulf %151, %173 : vector<8x128xf32>
    %176 = vector.extract_strided_slice %35 {offsets = [0, 3], sizes = [8, 1], strides = [1, 1]} : vector<8x6xf32> to vector<8x1xf32>
    %177 = vector.extract_strided_slice %35 {offsets = [0, 4], sizes = [8, 1], strides = [1, 1]} : vector<8x6xf32> to vector<8x1xf32>
    %178 = arith.mulf %176, %177 : vector<8x1xf32>
    %179 = vector.extract_strided_slice %35 {offsets = [0, 5], sizes = [8, 1], strides = [1, 1]} : vector<8x6xf32> to vector<8x1xf32>
    %180 = arith.mulf %178, %179 : vector<8x1xf32>
    %c0_40 = arith.constant 0 : index
    %c0_41 = arith.constant 0 : index
    %c0_42 = arith.constant 0 : index
    %181 = vector.load %arg7[%c0_40, %c0_41, %c0_42] : memref<1x1x128xf32, #tpu.memory_space<vmem>>, vector<1x1x128xf32>
    %182 = vector.shape_cast %181 : vector<1x1x128xf32> to vector<1x128xf32>
    %183 = vector.broadcast %180 : vector<8x1xf32> to vector<8x128xf32>
    %184 = vector.broadcast %182 : vector<1x128xf32> to vector<8x128xf32>
    %185 = arith.addf %183, %184 : vector<8x128xf32>
    %186 = arith.subf %185, %174 : vector<8x128xf32>
    %cst_43 = arith.constant 9.99999997E-7 : f32
    %187 = vector.broadcast %cst_43 : f32 to vector<8x128xf32>
    %188 = arith.maximumf %186, %187 : vector<8x128xf32>
    %cst_44 = arith.constant 9.99999997E-7 : f32
    %189 = vector.broadcast %cst_44 : f32 to vector<8x128xf32>
    %190 = arith.maximumf %175, %189 : vector<8x128xf32>
    %191 = tpu.reciprocal %188 {approx = true} : vector<8x128xf32> -> vector<8x128xf32>
    %192 = tpu.reciprocal %190 {approx = true} : vector<8x128xf32> -> vector<8x128xf32>
    %193 = arith.mulf %174, %191 : vector<8x128xf32>
    %194 = arith.mulf %188, %192 : vector<8x128xf32>
    %195 = arith.addf %193, %194 : vector<8x128xf32>
    %cst_45 = arith.constant 1.000000e+00 : f32
    %196 = vector.broadcast %cst_45 : f32 to vector<8x128xf32>
    %197 = arith.subf %195, %196 : vector<8x128xf32>
    %cst_46 = arith.constant 1.000000e+00 : f32
    %198 = vector.broadcast %cst_46 : f32 to vector<8x128xf32>
    %199 = arith.mulf %198, %197 : vector<8x128xf32>
    %200 = arith.subf %91, %199 : vector<8x128xf32>
    %c0_47 = arith.constant 0 : index
    %c0_48 = arith.constant 0 : index
    %c0_49 = arith.constant 0 : index
    %201 = vector.load %arg9[%c0_47, %c0_48, %c0_49] : memref<1x8x128xf32, #tpu.memory_space<vmem>>, vector<1x8x128xf32>
    %202 = vector.shape_cast %201 : vector<1x8x128xf32> to vector<8x128xf32>
    %203 = vector.shape_cast %200 : vector<8x128xf32> to vector<1x8x128xf32>
    tpu.vector_store %arg9[%c0_47, %c0_48, %c0_49], %203 {strides = array<i32>} : memref<1x8x128xf32, #tpu.memory_space<vmem>>, vector<1x8x128xf32>,
    return
  }
  func.func @transform_0(%arg0: i32, %arg1: i32) -> (i32, i32, i32) {
    %c0_i32 = arith.constant 0 : i32
    %c0_i32_0 = arith.constant 0 : i32
    return %arg0, %arg1, %c0_i32 : i32, i32, i32
  }
  func.func @transform_1(%arg0: i32, %arg1: i32) -> (i32, i32, i32) {
    %c0_i32 = arith.constant 0 : i32
    %c0_i32_0 = arith.constant 0 : i32
    return %arg0, %arg1, %c0_i32 : i32, i32, i32
  }
  func.func @transform_2(%arg0: i32, %arg1: i32) -> (i32, i32, i32) {
    %c0_i32 = arith.constant 0 : i32
    %c0_i32_0 = arith.constant 0 : i32
    %c0_i32_1 = arith.constant 0 : i32
    return %arg0, %c0_i32, %c0_i32_0 : i32, i32, i32
  }
  func.func @transform_3(%arg0: i32, %arg1: i32) -> (i32, i32, i32) {
    %c0_i32 = arith.constant 0 : i32
    %c0_i32_0 = arith.constant 0 : i32
    %c0_i32_1 = arith.constant 0 : i32
    return %arg0, %c0_i32, %c0_i32_0 : i32, i32, i32
  }
  func.func @transform_4(%arg0: i32, %arg1: i32) -> (i32, i32, i32) {
    %c0_i32 = arith.constant 0 : i32
    %c0_i32_0 = arith.constant 0 : i32
    %c0_i32_1 = arith.constant 0 : i32
    return %arg0, %c0_i32, %c0_i32_0 : i32, i32, i32
  }
  func.func @transform_5(%arg0: i32, %arg1: i32) -> (i32, i32, i32) {
    %c0_i32 = arith.constant 0 : i32
    %c0_i32_0 = arith.constant 0 : i32
    %c0_i32_1 = arith.constant 0 : i32
    return %arg0, %c0_i32, %c0_i32_0 : i32, i32, i32
  }
  func.func @transform_6(%arg0: i32, %arg1: i32) -> (i32, i32, i32) {
    %c0_i32 = arith.constant 0 : i32
    %c0_i32_0 = arith.constant 0 : i32
    %c0_i32_1 = arith.constant 0 : i32
    return %arg0, %c0_i32, %c0_i32_0 : i32, i32, i32
  }
  func.func @transform_7(%arg0: i32, %arg1: i32) -> (i32, i32, i32) {
    %c0_i32 = arith.constant 0 : i32
    %c0_i32_0 = arith.constant 0 : i32
    return %arg0, %arg1, %c0_i32 : i32, i32, i32
  }
}

</mosaic_0001>

<llo_original>
// kernel: tpu_custom_call.1
$region0: #{tpu_custom_call.1}
  #allocation0 [shape = 'u32[]', space=smem, size = 0x4, offset = 0x4, fixed_abs, tag = 'smem constant byte address 0x4 - core index']
  #allocation1 [shape = 'u32[144,128]{1,0:T(1,128)}', space=vmem, size = 0x12000, scoped, tag = 'internal scratch']
  %s0 = inlined_call_operand.vmem [shape: f32[2,8,32], index: 0, kind: input, shape index: {}]
  %s1 = inlined_call_operand.vmem [shape: f32[2,8,6], index: 1, kind: input, shape index: {}]
  %s2 = inlined_call_operand.vmem [shape: f32[2,6,128], index: 2, kind: input, shape index: {}]
  %s3 = inlined_call_operand.vmem [shape: f32[2,3,128], index: 3, kind: input, shape index: {}]
  %s4 = inlined_call_operand.vmem [shape: f32[2,3,128], index: 4, kind: input, shape index: {}]
  %s5 = inlined_call_operand.vmem [shape: f32[2,1,128], index: 5, kind: input, shape index: {}]
  %s6 = inlined_call_operand.vmem [shape: bf16[2,32,128], index: 6, kind: input, shape index: {}]
  %s7 = inlined_call_operand.hbm [shape: f32[2,8,128], index: 7, kind: output, shape index: {}]
  %s8 = sld [smem:[#allocation0]]
  $region61: #{tpu_custom_call.1} parent=0
    _
  %s10 = ssub.s32 1, %s8
  %s11 = scalar_select 0, %s10, %s8
  $region1: #{tpu_custom_call.1} parent=0
    #allocation2 [shape = 'u8[8192]{0}', space=vmem, size = 0x2000, scoped, tag = 'output window, operand 0']
    #allocation3 [shape = 's32[2]{0}', space=sflag, size = 0x8, scoped, tag = 'scoped memory for tpu_custom_call.1']
    %12 = vsyncpa [#allocation3], 0
    %s13 = scalar_lea.sflag [#allocation3], 1
    %14 = vsyncpa %s13, 0
    loop: start=0, step=1, limit=4
    $region2: #{tpu_custom_call.1} parent=1 // loop_pre_header
      _
    $region3: #{tpu_custom_call.1} parent=1 // loop_header
      %s16 = sphi 0, %s20
      %p17 = scmp.ge.s32.totalorder %s16, 4
      %s23 = sphi 0, %s35
      %s24 = sphi 0, %s31
      %s25 = sphi 0, %s23
      %s26 = sphi 0, %s24
      %s27 = sphi 0, %s25
      %s28 = sphi 0, %s26
      %s40 = sphi 0, %s42
      %s43 = sphi 0, %s40
      %s44 = sphi 0, %s43
      %s60 = sphi 0, %s44
      %s68 = sphi 0, %s70
      %s71 = sphi 0, %s68
      %s72 = sphi 0, %s71
      %s88 = sphi 0, %s72
      %s94 = sphi 0, %s96
      %s97 = sphi 0, %s94
      %s98 = sphi 0, %s97
      %s114 = sphi 0, %s98
      %s120 = sphi 0, %s122
      %s123 = sphi 0, %s120
      %s124 = sphi 0, %s123
      %s140 = sphi 0, %s124
      %s146 = sphi 0, %s148
      %s149 = sphi 0, %s146
      %s150 = sphi 0, %s149
      %s166 = sphi 0, %s150
      %s172 = sphi 0, %s174
      %s175 = sphi 0, %s172
      %s176 = sphi 0, %s175
      %s192 = sphi 0, %s176
      %s198 = sphi 0, %s200
      %s201 = sphi 0, %s198
      %s202 = sphi 0, %s201
      %s218 = sphi 0, %s202
      %s226 = sphi 0, %s228
      %s229 = sphi 0, %s226
      %s230 = sphi 0, %s229
      %s246 = sphi 0, %s230
    $region4: #{tpu_custom_call.1} parent=1 // loop_header_branch
      %19 = sbr.rel (%p17) target = $region8
    $region5: #{tpu_custom_call.1} parent=1 // loop_body
      %s21 = ssub.s32 %s16, 1
      %s22 = ssub.s32 %s16, 2
      %s29 = sadd.s32 1, %s24
      %p30 = scmp.ge.s32.totalorder %s29, 1
      %s31 = scalar_select %p30, 0, %s29
      %s32 = sadd.s32 1, %s23
      %s33 = scalar_select %p30, %s32, %s23
      %p34 = scmp.ge.s32.totalorder %s33, 2
      %s35 = scalar_select %p34, 0, %s33
      %s36 = ssub.s32 %s23, %s35
      %s37 = ssub.s32 %s24, %s31
      %s38 = sor.u32 %s36, %s37
      %p39 = scmp.eq.s32.totalorder %s38, 0
      %s41 = sadd.s32 %s40, 1
      %s42 = scalar_select %p39, %s40, %s41
      %p45 = pneg %p39
      %p46 = scmp.eq.s32.totalorder %s16, 1
      %p47 = por %p45, %p46
      %p48 = scmp.ne.s32.totalorder %s40, %s43
      %p49 = scmp.eq.s32.totalorder %s16, 0
      %p50 = por %p48, %p49
      %p51 = scmp.ne.s32.totalorder %s40, %s43
      %p52 = scmp.eq.s32.totalorder %s21, 1
      %p53 = por %p51, %p52
      %p54 = scmp.ne.s32.totalorder %s43, %s44
      %p55 = scmp.eq.s32.totalorder %s21, 0
      %p56 = por %p54, %p55
      %p57 = scmp.ne.s32.totalorder %s43, %s44
      %p58 = scmp.eq.s32.totalorder %s22, 1
      %p59 = por %p57, %p58
      %p61 = scmp.ne.s32.totalorder %s44, %s60
      %p62 = scmp.eq.s32.totalorder %s22, 0
      %p63 = por %p61, %p62
      %s64 = ssub.s32 %s23, %s35
      %s65 = ssub.s32 %s24, %s31
      %s66 = sor.u32 %s64, %s65
      %p67 = scmp.eq.s32.totalorder %s66, 0
      %s69 = sadd.s32 %s68, 1
      %s70 = scalar_select %p67, %s68, %s69
      %p73 = pneg %p67
      %p74 = scmp.eq.s32.totalorder %s16, 1
      %p75 = por %p73, %p74
      %p76 = scmp.ne.s32.totalorder %s68, %s71
      %p77 = scmp.eq.s32.totalorder %s16, 0
      %p78 = por %p76, %p77
      %p79 = scmp.ne.s32.totalorder %s68, %s71
      %p80 = scmp.eq.s32.totalorder %s21, 1
      %p81 = por %p79, %p80
      %p82 = scmp.ne.s32.totalorder %s71, %s72
      %p83 = scmp.eq.s32.totalorder %s21, 0
      %p84 = por %p82, %p83
      %p85 = scmp.ne.s32.totalorder %s71, %s72
      %p86 = scmp.eq.s32.totalorder %s22, 1
      %p87 = por %p85, %p86
      %p89 = scmp.ne.s32.totalorder %s72, %s88
      %p90 = scmp.eq.s32.totalorder %s22, 0
      %p91 = por %p89, %p90
      %s92 = ssub.s32 %s23, %s35
      %p93 = scmp.eq.s32.totalorder %s92, 0
      %s95 = sadd.s32 %s94, 1
      %s96 = scalar_select %p93, %s94, %s95
      %p99 = pneg %p93
      %p100 = scmp.eq.s32.totalorder %s16, 1
      %p101 = por %p99, %p100
      %p102 = scmp.ne.s32.totalorder %s94, %s97
      %p103 = scmp.eq.s32.totalorder %s16, 0
      %p104 = por %p102, %p103
      %p105 = scmp.ne.s32.totalorder %s94, %s97
      %p106 = scmp.eq.s32.totalorder %s21, 1
      %p107 = por %p105, %p106
      %p108 = scmp.ne.s32.totalorder %s97, %s98
      %p109 = scmp.eq.s32.totalorder %s21, 0
      %p110 = por %p108, %p109
      %p111 = scmp.ne.s32.totalorder %s97, %s98
      %p112 = scmp.eq.s32.totalorder %s22, 1
      %p113 = por %p111, %p112
      %p115 = scmp.ne.s32.totalorder %s98, %s114
      %p116 = scmp.eq.s32.totalorder %s22, 0
      %p117 = por %p115, %p116
      %s118 = ssub.s32 %s23, %s35
      %p119 = scmp.eq.s32.totalorder %s118, 0
      %s121 = sadd.s32 %s120, 1
      %s122 = scalar_select %p119, %s120, %s121
      %p125 = pneg %p119
      %p126 = scmp.eq.s32.totalorder %s16, 1
      %p127 = por %p125, %p126
      %p128 = scmp.ne.s32.totalorder %s120, %s123
      %p129 = scmp.eq.s32.totalorder %s16, 0
      %p130 = por %p128, %p129
      %p131 = scmp.ne.s32.totalorder %s120, %s123
      %p132 = scmp.eq.s32.totalorder %s21, 1
      %p133 = por %p131, %p132
      %p134 = scmp.ne.s32.totalorder %s123, %s124
      %p135 = scmp.eq.s32.totalorder %s21, 0
      %p136 = por %p134, %p135
      %p137 = scmp.ne.s32.totalorder %s123, %s124
      %p138 = scmp.eq.s32.totalorder %s22, 1
      %p139 = por %p137, %p138
      %p141 = scmp.ne.s32.totalorder %s124, %s140
      %p142 = scmp.eq.s32.totalorder %s22, 0
      %p143 = por %p141, %p142
      %s144 = ssub.s32 %s23, %s35
      %p145 = scmp.eq.s32.totalorder %s144, 0
      %s147 = sadd.s32 %s146, 1
      %s148 = scalar_select %p145, %s146, %s147
      %p151 = pneg %p145
      %p152 = scmp.eq.s32.totalorder %s16, 1
      %p153 = por %p151, %p152
      %p154 = scmp.ne.s32.totalorder %s146, %s149
      %p155 = scmp.eq.s32.totalorder %s16, 0
      %p156 = por %p154, %p155
      %p157 = scmp.ne.s32.totalorder %s146, %s149
      %p158 = scmp.eq.s32.totalorder %s21, 1
      %p159 = por %p157, %p158
      %p160 = scmp.ne.s32.totalorder %s149, %s150
      %p161 = scmp.eq.s32.totalorder %s21, 0
      %p162 = por %p160, %p161
      %p163 = scmp.ne.s32.totalorder %s149, %s150
      %p164 = scmp.eq.s32.totalorder %s22, 1
      %p165 = por %p163, %p164
      %p167 = scmp.ne.s32.totalorder %s150, %s166
      %p168 = scmp.eq.s32.totalorder %s22, 0
      %p169 = por %p167, %p168
      %s170 = ssub.s32 %s23, %s35
      %p171 = scmp.eq.s32.totalorder %s170, 0
      %s173 = sadd.s32 %s172, 1
      %s174 = scalar_select %p171, %s172, %s173
      %p177 = pneg %p171
      %p178 = scmp.eq.s32.totalorder %s16, 1
      %p179 = por %p177, %p178
      %p180 = scmp.ne.s32.totalorder %s172, %s175
      %p181 = scmp.eq.s32.totalorder %s16, 0
      %p182 = por %p180, %p181
      %p183 = scmp.ne.s32.totalorder %s172, %s175
      %p184 = scmp.eq.s32.totalorder %s21, 1
      %p185 = por %p183, %p184
      %p186 = scmp.ne.s32.totalorder %s175, %s176
      %p187 = scmp.eq.s32.totalorder %s21, 0
      %p188 = por %p186, %p187
      %p189 = scmp.ne.s32.totalorder %s175, %s176
      %p190 = scmp.eq.s32.totalorder %s22, 1
      %p191 = por %p189, %p190
      %p193 = scmp.ne.s32.totalorder %s176, %s192
      %p194 = scmp.eq.s32.totalorder %s22, 0
      %p195 = por %p193, %p194
      %s196 = ssub.s32 %s23, %s35
      %p197 = scmp.eq.s32.totalorder %s196, 0
      %s199 = sadd.s32 %s198, 1
      %s200 = scalar_select %p197, %s198, %s199
      %p203 = pneg %p197
      %p204 = scmp.eq.s32.totalorder %s16, 1
      %p205 = por %p203, %p204
      %p206 = scmp.ne.s32.totalorder %s198, %s201
      %p207 = scmp.eq.s32.totalorder %s16, 0
      %p208 = por %p206, %p207
      %p209 = scmp.ne.s32.totalorder %s198, %s201
      %p210 = scmp.eq.s32.totalorder %s21, 1
      %p211 = por %p209, %p210
      %p212 = scmp.ne.s32.totalorder %s201, %s202
      %p213 = scmp.eq.s32.totalorder %s21, 0
      %p214 = por %p212, %p213
      %p215 = scmp.ne.s32.totalorder %s201, %s202
      %p216 = scmp.eq.s32.totalorder %s22, 1
      %p217 = por %p215, %p216
      %p219 = scmp.ne.s32.totalorder %s202, %s218
      %p220 = scmp.eq.s32.totalorder %s22, 0
      %p221 = por %p219, %p220
      %s222 = ssub.s32 %s23, %s35
      %s223 = ssub.s32 %s24, %s31
      %s224 = sor.u32 %s222, %s223
      %p225 = scmp.eq.s32.totalorder %s224, 0
      %s227 = sadd.s32 %s226, 1
      %s228 = scalar_select %p225, %s226, %s227
      %p231 = pneg %p225
      %p232 = scmp.eq.s32.totalorder %s16, 1
      %p233 = por %p231, %p232
      %p234 = scmp.ne.s32.totalorder %s226, %s229
      %p235 = scmp.eq.s32.totalorder %s16, 0
      %p236 = por %p234, %p235
      %p237 = scmp.ne.s32.totalorder %s226, %s229
      %p238 = scmp.eq.s32.totalorder %s21, 1
      %p239 = por %p237, %p238
      %p240 = scmp.ne.s32.totalorder %s229, %s230
      %p241 = scmp.eq.s32.totalorder %s21, 0
      %p242 = por %p240, %p241
      %p243 = scmp.ne.s32.totalorder %s229, %s230
      %p244 = scmp.eq.s32.totalorder %s22, 1
      %p245 = por %p243, %p244
      %p247 = scmp.ne.s32.totalorder %s230, %s246
      %p248 = scmp.eq.s32.totalorder %s22, 0
      %p249 = por %p247, %p248
      %p250 = scmp.le.s32.totalorder 1, %s16
      %p251 = scmp.lt.s32.totalorder %s16, 3
      %p252 = pnand %p250, %p251
      %p253 = pneg %p252
      // Predicated region
      $region9: #{tpu_custom_call.1} parent=5 // pred_check
        _
      $region10: #{tpu_custom_call.1} parent=5 // pred_check_branch
        %255 = sbr.rel (%p252) target = $region12
      $region11: #{tpu_custom_call.1} parent=5 // pred_region
        %s256 = ssub.s32 %s16, 1
      $region12: #{tpu_custom_call.1} parent=5 // pred_fallthru
        _
      %p257 = scmp.lt.s32.totalorder %s16, 2
      // Predicated region
      $region13: #{tpu_custom_call.1} parent=5 // pred_check
        %p258 = pneg %p257
      $region14: #{tpu_custom_call.1} parent=5 // pred_check_branch
        %260 = sbr.rel (%p258) target = $region16
      $region15: #{tpu_custom_call.1} parent=5 // pred_region
        // Predicated region
        $region17: #{tpu_custom_call.1} parent=15 // pred_check
          %p261 = pneg %p50
        $region18: #{tpu_custom_call.1} parent=15 // pred_check_branch
          %263 = sbr.rel (%p261) target = $region20
        $region19: #{tpu_custom_call.1} parent=15 // pred_region
          %p264 = scmp.lt.s32.totalorder %s23, 1
          %s265 = scalar_select %p264, %s23, 1
          %p266 = scmp.lt.s32.totalorder %s24, 0
          %s267 = scalar_select %p266, %s24, 0
          %s268 = sadd.s32 %s267, %s265
          %s269 = smul.addr %s268, 8
          %s270 = scalar_lea.vmem %s0, %s269
        $region20: #{tpu_custom_call.1} parent=15 // pred_fallthru
          _
        // Predicated region
        $region21: #{tpu_custom_call.1} parent=15 // pred_check
          %p271 = pneg %p78
        $region22: #{tpu_custom_call.1} parent=15 // pred_check_branch
          %273 = sbr.rel (%p271) target = $region24
        $region23: #{tpu_custom_call.1} parent=15 // pred_region
          %p274 = scmp.lt.s32.totalorder %s23, 1
          %s275 = scalar_select %p274, %s23, 1
          %p276 = scmp.lt.s32.totalorder %s24, 0
          %s277 = scalar_select %p276, %s24, 0
          %s278 = sadd.s32 %s277, %s275
          %s279 = smul.addr %s278, 8
          %s280 = scalar_lea.vmem %s1, %s279
        $region24: #{tpu_custom_call.1} parent=15 // pred_fallthru
          _
        // Predicated region
        $region25: #{tpu_custom_call.1} parent=15 // pred_check
          %p281 = pneg %p104
        $region26: #{tpu_custom_call.1} parent=15 // pred_check_branch
          %283 = sbr.rel (%p281) target = $region28
        $region27: #{tpu_custom_call.1} parent=15 // pred_region
          %p284 = scmp.lt.s32.totalorder %s23, 1
          %s285 = scalar_select %p284, %s23, 1
          %s286 = smul.addr %s285, 8
          %s287 = scalar_lea.vmem %s2, %s286
        $region28: #{tpu_custom_call.1} parent=15 // pred_fallthru
          _
        // Predicated region
        $region29: #{tpu_custom_call.1} parent=15 // pred_check
          %p288 = pneg %p130
        $region30: #{tpu_custom_call.1} parent=15 // pred_check_branch
          %290 = sbr.rel (%p288) target = $region32
        $region31: #{tpu_custom_call.1} parent=15 // pred_region
          %p291 = scmp.lt.s32.totalorder %s23, 1
          %s292 = scalar_select %p291, %s23, 1
          %s293 = smul.addr %s292, 4
          %s294 = scalar_lea.vmem %s3, %s293
        $region32: #{tpu_custom_call.1} parent=15 // pred_fallthru
          _
        // Predicated region
        $region33: #{tpu_custom_call.1} parent=15 // pred_check
          %p295 = pneg %p156
        $region34: #{tpu_custom_call.1} parent=15 // pred_check_branch
          %297 = sbr.rel (%p295) target = $region36
        $region35: #{tpu_custom_call.1} parent=15 // pred_region
          %p298 = scmp.lt.s32.totalorder %s23, 1
          %s299 = scalar_select %p298, %s23, 1
          %s300 = smul.addr %s299, 4
          %s301 = scalar_lea.vmem %s4, %s300
        $region36: #{tpu_custom_call.1} parent=15 // pred_fallthru
          _
        // Predicated region
        $region37: #{tpu_custom_call.1} parent=15 // pred_check
          %p302 = pneg %p182
        $region38: #{tpu_custom_call.1} parent=15 // pred_check_branch
          %304 = sbr.rel (%p302) target = $region40
        $region39: #{tpu_custom_call.1} parent=15 // pred_region
          %p305 = scmp.lt.s32.totalorder %s23, 1
          %s306 = scalar_select %p305, %s23, 1
          %s307 = scalar_lea.vmem %s5, %s306
        $region40: #{tpu_custom_call.1} parent=15 // pred_fallthru
          _
        // Predicated region
        $region41: #{tpu_custom_call.1} parent=15 // pred_check
          %p308 = pneg %p208
        $region42: #{tpu_custom_call.1} parent=15 // pred_check_branch
          %310 = sbr.rel (%p308) target = $region44
        $region43: #{tpu_custom_call.1} parent=15 // pred_region
          %p311 = scmp.lt.s32.totalorder %s23, 1
          %s312 = scalar_select %p311, %s23, 1
          %s313 = smul.addr %s312, 4
          %s314 = smul.addr %s313, 4
          %s315 = scalar_lea.vmem %s6, %s314
        $region44: #{tpu_custom_call.1} parent=15 // pred_fallthru
          _
      $region16: #{tpu_custom_call.1} parent=5 // pred_fallthru
        _
      %p316 = scmp.le.s32.totalorder 1, %s16
      %p317 = scmp.lt.s32.totalorder %s16, 3
      %p318 = pnand %p316, %p317
      %p319 = pneg %p318
      // Predicated region
      $region45: #{tpu_custom_call.1} parent=5 // pred_check
        _
      $region46: #{tpu_custom_call.1} parent=5 // pred_check_branch
        %321 = sbr.rel (%p318) target = $region48
      $region47: #{tpu_custom_call.1} parent=5 // pred_region
        %s322 = ssub.s32 %s16, 1
        %p323 = scmp.lt.s32.totalorder %s25, 1
        %s324 = scalar_select %p323, %s25, 1
        %p325 = scmp.lt.s32.totalorder %s26, 0
        %s326 = scalar_select %p325, %s26, 0
        %s327 = sadd.s32 %s326, %s324
        %s328 = smul.addr %s327, 8
        %s329 = scalar_lea.vmem %s0, %s328
        %p330 = pneg %p56
        %p331 = pneg %p53
        %p332 = scmp.lt.s32.totalorder %s25, 1
        %s333 = scalar_select %p332, %s25, 1
        %p334 = scmp.lt.s32.totalorder %s26, 0
        %s335 = scalar_select %p334, %s26, 0
        %s336 = sadd.s32 %s335, %s333
        %s337 = smul.addr %s336, 8
        %s338 = scalar_lea.vmem %s1, %s337
        %p339 = pneg %p84
        %p340 = pneg %p81
        %p341 = scmp.lt.s32.totalorder %s25, 1
        %s342 = scalar_select %p341, %s25, 1
        %s343 = smul.addr %s342, 8
        %s344 = scalar_lea.vmem %s2, %s343
        %p345 = pneg %p110
        %p346 = pneg %p107
        %p347 = scmp.lt.s32.totalorder %s25, 1
        %s348 = scalar_select %p347, %s25, 1
        %s349 = smul.addr %s348, 4
        %s350 = scalar_lea.vmem %s3, %s349
        %p351 = pneg %p136
        %p352 = pneg %p133
        %p353 = scmp.lt.s32.totalorder %s25, 1
        %s354 = scalar_select %p353, %s25, 1
        %s355 = smul.addr %s354, 4
        %s356 = scalar_lea.vmem %s4, %s355
        %p357 = pneg %p162
        %p358 = pneg %p159
        %p359 = scmp.lt.s32.totalorder %s25, 1
        %s360 = scalar_select %p359, %s25, 1
        %s361 = scalar_lea.vmem %s5, %s360
        %p362 = pneg %p188
        %p363 = pneg %p185
        %p364 = scmp.lt.s32.totalorder %s25, 1
        %s365 = scalar_select %p364, %s25, 1
        %s366 = smul.addr %s365, 4
        %s367 = smul.addr %s366, 4
        %s368 = scalar_lea.vmem %s6, %s367
        %p369 = pneg %p214
        %p370 = pneg %p211
        %p371 = pneg %p242
        %p372 = pneg %p239
        %s373 = sand.u32 %s229, 1
        %s374 = scalar_lea.sflag [#allocation3], %s373
        %s375 = sand.u32 %s229, 1
        %s376 = smul.addr %s375, 8
        %s377 = scalar_lea.vmem [#allocation2], %s376
        %p378 = scmp.lt.s32.totalorder %s25, 1
        %s379 = scalar_select %p378, %s25, 1
        %p380 = scmp.lt.s32.totalorder %s26, 0
        %s381 = scalar_select %p380, %s26, 0
        %s382 = sadd.s32 %s381, %s379
        %s383 = smul.addr %s382, 8
        %s384 = scalar_lea.vmem %s0, %s383
        %p385 = scmp.lt.s32.totalorder %s25, 1
        %s386 = scalar_select %p385, %s25, 1
        %p387 = scmp.lt.s32.totalorder %s26, 0
        %s388 = scalar_select %p387, %s26, 0
        %s389 = sadd.s32 %s388, %s386
        %s390 = smul.addr %s389, 8
        %s391 = scalar_lea.vmem %s1, %s390
        %p392 = scmp.lt.s32.totalorder %s25, 1
        %s393 = scalar_select %p392, %s25, 1
        %s394 = smul.addr %s393, 8
        %s395 = scalar_lea.vmem %s2, %s394
        %p396 = scmp.lt.s32.totalorder %s25, 1
        %s397 = scalar_select %p396, %s25, 1
        %s398 = smul.addr %s397, 4
        %s399 = scalar_lea.vmem %s3, %s398
        %p400 = scmp.lt.s32.totalorder %s25, 1
        %s401 = scalar_select %p400, %s25, 1
        %s402 = smul.addr %s401, 4
        %s403 = scalar_lea.vmem %s4, %s402
        %p404 = scmp.lt.s32.totalorder %s25, 1
        %s405 = scalar_select %p404, %s25, 1
        %s406 = scalar_lea.vmem %s5, %s405
        %p407 = scmp.lt.s32.totalorder %s25, 1
        %s408 = scalar_select %p407, %s25, 1
        %s409 = smul.addr %s408, 4
        %s410 = smul.addr %s409, 4
        %s411 = scalar_lea.vmem %s6, %s410
        %v413 = vld [vmem:[%s384] sm:$0xff]
        %v414 = vxor.u32 %v413, 2147483648
        %v415 = vmul.f32 %v414, 1.442695
        %v416 = vpow.pop %v415
        %v417 = vadd.f32 %v416, 1.0
        %v418 = vrcp.pop %v417
        %v419 = vmul.f32 1.0, %v418
        %v420 = vsub.f32 1.0, %v419
        %v421 = vmul.f32 %v419, %v419
        %v422 = vmul.f32 %v421, 0.75
        %v423 = vadd.f32 %v420, 1e-08
        %v424 = vlog2.pop %v423
        %v425 = vmul.f32 %v424, 0.6931472
        %v426 = vsub.f32 0.0, %v425
        %v427 = vmul.f32 %v422, %v426
        %v428 = vmul.f32 %v420, %v420
        %v429 = vmul.f32 %v428, 0.25
        %v430 = vadd.f32 %v419, 1e-08
        %v431 = vlog2.pop %v430
        %v432 = vmul.f32 %v431, 0.6931472
        %v433 = vsub.f32 0.0, %v432
        %v434 = vmul.f32 %v429, %v433
        %v435 = vsub.f32 %v434, %v427
        %v436 = vpack.c.bf16 %v435, %v435
        %v437 = vld [vmem:[%s411] sm:$0xf]
        %v438 = vld [vmem:[%s411 + $0x4] sm:$0xf]
        %v439 = vld [vmem:[%s411 + $0x8] sm:$0xf]
        %v440 = vld [vmem:[%s411 + $0xc] sm:$0xf]
        %v441 = vld [vmem:[%s391] sm:$0xff]
        %v442 = vld [vmem:[%s395] sm:$0x3f]
        %444 = vset.pattern.permute.xlu0 0
        %445 = vperm.xlu0 %444, %v441
        %v446 = vpop.permute.xlu0 %445
        %v448 = vlaneseq
        %v449 = vshrl.u32 %v448, 7
        %v450 = vsub.s32 0, %v449
        %v451 = vrot.slane %v442, %v450
        %v452 = vsub.f32 %v446, %v451
        %v453 = vand.u32 2147483647, %v452
        %v458 = vunpack.c.l.b16 %v437
        %v459 = vunpack.c.l.b16 %v438
        %v460 = vunpack.c.l.b16 %v439
        %v461 = vunpack.c.l.b16 %v440
        %v462 = vpack.c.b16 %v459, %v458
        %v463 = vpack.c.b16 %v461, %v460
        %vm466 = vcmask 261120
        %v468 = vsel %vm466, %v436, 0
        %470 = vmatprep.subr.bf16.mxu0 0
        %471 = vmatpush1.bf16.msra.mxu0 %v462
        %472 = vmatprep.subr.bf16.mxu0 0
        %473 = vmatpush1.bf16.msra.mxu0 %v463
        %474 = vmatprep.subr.bf16.mxu0 0
        %475 = vmatpush1.bf16.msra.mxu0 0
        %476 = vmatprep.subr.bf16.mxu0 0
        %477 = vmatpush1.bf16.msra.mxu0 0
        %478 = vmatprep.subr.bf16.mxu0 0
        %479 = vmatpush1.bf16.msra.mxu0 0
        %480 = vmatprep.subr.bf16.mxu0 0
        %481 = vmatpush1.bf16.msra.mxu0 0
        %482 = vmatprep.subr.bf16.mxu0 0
        %483 = vmatpush1.bf16.msra.mxu0 0
        %484 = vmatprep.subr.bf16.mxu0 0
        %485 = vmatpush1.bf16.msra.mxu0 0
        %486 = vmatprep.subr.bf16.mxu0 0
        %487 = vmatpush1.bf16.msra.mxu0 0
        %488 = vmatprep.subr.bf16.mxu0 0
        %489 = vmatpush1.bf16.msra.mxu0 0
        %490 = vmatprep.subr.bf16.mxu0 0
        %491 = vmatpush1.bf16.msra.mxu0 0
        %492 = vmatprep.subr.bf16.mxu0 0
        %493 = vmatpush1.bf16.msra.mxu0 0
        %494 = vmatprep.subr.bf16.mxu0 0
        %495 = vmatpush1.bf16.msra.mxu0 0
        %496 = vmatprep.subr.bf16.mxu0 0
        %497 = vmatpush1.bf16.msra.mxu0 0
        %498 = vmatprep.subr.bf16.mxu0 0
        %499 = vmatpush1.bf16.msra.mxu0 0
        %500 = vmatprep.subr.bf16.mxu0 0
        %501 = vmatpush1.bf16.msra.mxu0 0
        %502 = vmatprep.mubr.bf16.mxu0 0
        %503 = vmatmul.mubr.bf16.gmra.mrb[0].mxu0 %v468
        %v504 = vpop.f32.mrb[0].mxu0
        %v505 = vadd.f32 %v453, %v504
        %v506 = vpop.f32.mrb[0].mxu0
        %v507 = vpop.f32.mrb[0].mxu0
        %v508 = vpop.f32.mrb[0].mxu0
        %509 = vdwg.mxu0
        %510 = vset.pattern.permute.xlu0 1
        %511 = vperm.xlu0 %510, %v441
        %v512 = vpop.permute.xlu0 %511
        %v514 = vlaneseq
        %v515 = vshrl.u32 %v514, 7
        %v516 = vsub.s32 1, %v515
        %v517 = vrot.slane %v442, %v516
        %v518 = vsub.f32 %v512, %v517
        %v519 = vand.u32 2147483647, %v518
        %v520 = vadd.f32 %v505, %v519
        %521 = vset.pattern.permute.xlu0 2
        %522 = vperm.xlu0 %521, %v441
        %v523 = vpop.permute.xlu0 %522
        %v525 = vlaneseq
        %v526 = vshrl.u32 %v525, 7
        %v527 = vsub.s32 2, %v526
        %v528 = vrot.slane %v442, %v527
        %v529 = vsub.f32 %v523, %v528
        %v530 = vand.u32 2147483647, %v529
        %v531 = vadd.f32 %v520, %v530
        %532 = vset.pattern.permute.xlu0 3
        %533 = vperm.xlu0 %532, %v441
        %v534 = vpop.permute.xlu0 %533
        %v536 = vlaneseq
        %v537 = vshrl.u32 %v536, 7
        %v538 = vsub.s32 3, %v537
        %v539 = vrot.slane %v442, %v538
        %v540 = vsub.f32 %v534, %v539
        %v541 = vand.u32 2147483647, %v540
        %v542 = vadd.f32 %v531, %v541
        %543 = vset.pattern.permute.xlu0 4
        %544 = vperm.xlu0 %543, %v441
        %v545 = vpop.permute.xlu0 %544
        %v547 = vlaneseq
        %v548 = vshrl.u32 %v547, 7
        %v549 = vsub.s32 4, %v548
        %v550 = vrot.slane %v442, %v549
        %v551 = vsub.f32 %v545, %v550
        %v552 = vand.u32 2147483647, %v551
        %v553 = vadd.f32 %v542, %v552
        %554 = vset.pattern.permute.xlu0 5
        %555 = vperm.xlu0 %554, %v441
        %v556 = vpop.permute.xlu0 %555
        %v558 = vlaneseq
        %v559 = vshrl.u32 %v558, 7
        %v560 = vsub.s32 5, %v559
        %v561 = vrot.slane %v442, %v560
        %v562 = vsub.f32 %v556, %v561
        %v563 = vand.u32 2147483647, %v562
        %v564 = vadd.f32 %v553, %v563
        %v565 = vmul.f32 %v441, 0.5
        %567 = vrot.lane.b32.xlu0 %v565, 125
        %v568 = vpop.permute.xlu0 %567
        %v570 = vsub.f32 %v441, %v568
        %v571 = vadd.f32 %v441, %v568
        %v572 = vld [vmem:[%s399] sm:$0x7]
        %v573 = vld [vmem:[%s403] sm:$0x7]
        %575 = vset.pattern.permute.xlu0 0
        %576 = vperm.xlu0 %575, %v571
        %v577 = vpop.permute.xlu0 %576
        %v579 = vlaneseq
        %v580 = vshrl.u32 %v579, 7
        %v581 = vsub.s32 0, %v580
        %v582 = vrot.slane %v573, %v581
        %v583 = vmin.f32 %v577, %v582
        %585 = vset.pattern.permute.xlu0 0
        %586 = vperm.xlu0 %585, %v570
        %v587 = vpop.permute.xlu0 %586
        %v589 = vlaneseq
        %v590 = vshrl.u32 %v589, 7
        %v591 = vsub.s32 0, %v590
        %v592 = vrot.slane %v572, %v591
        %v593 = vmax.f32 %v587, %v592
        %v594 = vsub.f32 %v583, %v593
        %v595 = vmax.f32 %v594, 0.0
        %v596 = vmax.f32 %v577, %v582
        %v597 = vmin.f32 %v587, %v592
        %v598 = vsub.f32 %v596, %v597
        %v599 = vmax.f32 %v598, 0.0
        %600 = vset.pattern.permute.xlu0 1
        %601 = vperm.xlu0 %600, %v571
        %v602 = vpop.permute.xlu0 %601
        %v604 = vlaneseq
        %v605 = vshrl.u32 %v604, 7
        %v606 = vsub.s32 1, %v605
        %v607 = vrot.slane %v573, %v606
        %v608 = vmin.f32 %v602, %v607
        %609 = vset.pattern.permute.xlu0 1
        %610 = vperm.xlu0 %609, %v570
        %v611 = vpop.permute.xlu0 %610
        %v613 = vlaneseq
        %v614 = vshrl.u32 %v613, 7
        %v615 = vsub.s32 1, %v614
        %v616 = vrot.slane %v572, %v615
        %v617 = vmax.f32 %v611, %v616
        %v618 = vsub.f32 %v608, %v617
        %v619 = vmax.f32 %v618, 0.0
        %v620 = vmax.f32 %v602, %v607
        %v621 = vmin.f32 %v611, %v616
        %v622 = vsub.f32 %v620, %v621
        %v623 = vmax.f32 %v622, 0.0
        %v624 = vmul.f32 %v595, %v619
        %v625 = vmul.f32 %v599, %v623
        %626 = vset.pattern.permute.xlu0 2
        %627 = vperm.xlu0 %626, %v571
        %v628 = vpop.permute.xlu0 %627
        %v630 = vlaneseq
        %v631 = vshrl.u32 %v630, 7
        %v632 = vsub.s32 2, %v631
        %v633 = vrot.slane %v573, %v632
        %v634 = vmin.f32 %v628, %v633
        %635 = vset.pattern.permute.xlu0 2
        %636 = vperm.xlu0 %635, %v570
        %v637 = vpop.permute.xlu0 %636
        %v639 = vlaneseq
        %v640 = vshrl.u32 %v639, 7
        %v641 = vsub.s32 2, %v640
        %v642 = vrot.slane %v572, %v641
        %v643 = vmax.f32 %v637, %v642
        %v644 = vsub.f32 %v634, %v643
        %v645 = vmax.f32 %v644, 0.0
        %v646 = vmax.f32 %v628, %v633
        %v647 = vmin.f32 %v637, %v642
        %v648 = vsub.f32 %v646, %v647
        %v649 = vmax.f32 %v648, 0.0
        %v650 = vmul.f32 %v624, %v645
        %v651 = vmul.f32 %v625, %v649
        %652 = vrot.lane.b32.xlu0 %v441, 127
        %v653 = vpop.permute.xlu0 %652
        %v655 = vmul.f32 %v441, %v653
        %656 = vrot.lane.b32.xlu0 %v441, 126
        %v657 = vpop.permute.xlu0 %656
        %v659 = vmul.f32 %v655, %v657
        %v660 = vld [vmem:[%s406] sm:$0x1]
        %662 = vset.pattern.permute.xlu0 3
        %663 = vperm.xlu0 %662, %v659
        %v664 = vpop.permute.xlu0 %663
        %v667 = vlaneseq
        %v668 = vshrl.u32 %v667, 7
        %v669 = vsub.s32 0, %v668
        %v670 = vrot.slane %v660, %v669
        %v672 = vadd.f32 %v664, %v670
        %v673 = vsub.f32 %v672, %v650
        %v674 = vmax.f32 %v673, 1e-06
        %v675 = vmax.f32 %v651, 1e-06
        %v676 = vrcp.pop %v674
        %v677 = vrcp.pop %v675
        %v678 = vmul.f32 %v650, %v676
        %v679 = vmul.f32 %v674, %v677
        %v680 = vadd.f32 %v678, %v679
        %v681 = vsub.f32 %v680, 1.0
        %v682 = vsub.f32 %v564, %v681
        %683 = vst [vmem:[%s377] sm:$0xff] %v682
        %s684 = sand.u32 %s229, 1
        %s685 = scalar_lea.sflag [#allocation3], %s684
        %s686 = sand.u32 %s229, 1
        %s687 = smul.addr %s686, 8
        %s688 = scalar_lea.vmem [#allocation2], %s687
        // Predicated region
        $region49: #{tpu_custom_call.1} parent=47 // pred_check
          %p689 = pneg %p239
        $region50: #{tpu_custom_call.1} parent=47 // pred_check_branch
          %691 = sbr.rel (%p689) target = $region52
        $region51: #{tpu_custom_call.1} parent=47 // pred_region
          %s693 = ssub.s32 128, 128
          %694 = vsyncadd %s685, %s693
          %s695 = sadd.s32 %s26, %s25
          %s696 = smul.addr %s695, 128
          %s697 = scalar_lea.hbm %s7, %s696
          %s699 = sshll.u32 %s688, 4
          %s700 = int_to_ptr.vmem [resolvable:$true] %s699
          %702 = dma.vmem_to_hbm [thread:$0]  %s700, 128, %s697, %s685
        $region52: #{tpu_custom_call.1} parent=47 // pred_fallthru
          _
      $region48: #{tpu_custom_call.1} parent=5 // pred_fallthru
        _
      %p703 = scmp.le.s32.totalorder 2, %s16
      // Predicated region
      $region53: #{tpu_custom_call.1} parent=5 // pred_check
        %p704 = pneg %p703
      $region54: #{tpu_custom_call.1} parent=5 // pred_check_branch
        %706 = sbr.rel (%p704) target = $region56
      $region55: #{tpu_custom_call.1} parent=5 // pred_region
        %s707 = ssub.s32 %s16, 2
        // Predicated region
        $region57: #{tpu_custom_call.1} parent=55 // pred_check
          %p708 = pneg %p245
        $region58: #{tpu_custom_call.1} parent=55 // pred_check_branch
          %710 = sbr.rel (%p708) target = $region60
        $region59: #{tpu_custom_call.1} parent=55 // pred_region
          %s711 = sand.u32 %s230, 1
          %s712 = scalar_lea.sflag [#allocation3], %s711
          %s713 = sand.u32 %s230, 1
          %s714 = smul.addr %s713, 8
          %s715 = scalar_lea.vmem [#allocation2], %s714
          %716 = dma.done %s712, 128
        $region60: #{tpu_custom_call.1} parent=55 // pred_fallthru
          _
      $region56: #{tpu_custom_call.1} parent=5 // pred_fallthru
        _
    $region6: #{tpu_custom_call.1} parent=1 // loop_footer
      %s20 = sadd.s32 1, %s16
    $region7: #{tpu_custom_call.1} parent=1 // loop_footer_branch
      %15 = sbr.rel target = $region3
    $region8: #{tpu_custom_call.1} parent=1 // loop_exit
      _
    %717 = vsyncpa [#allocation3], 1
    %s718 = scalar_lea.sflag [#allocation3], 1
    %719 = vsyncpa %s718, 1

</llo_original>
